<compile_context>
chip_gen: v6e
topology: v6e:2x2x1
jax: 0.10.0
libtpu: 0.0.40
codegen_flags: <defaults>
</compile_context>

<pallas_src>
import jax
import jax.numpy as jnp
from jax.experimental import pallas as pl
from jax.experimental.pallas import tpu as pltpu


def _make_kernel(inv_temp, with_mask, return_attn):
    def kernel(*refs):
        q_ref, k_ref, v_ref = refs[0], refs[1], refs[2]
        nxt = 3
        m_ref = None
        if with_mask:
            m_ref = refs[nxt]
            nxt += 1
        out_ref = refs[nxt]
        nxt += 1
        attn_ref = refs[nxt] if return_attn else None

        q = q_ref[0]                       # (block_h, tq, D)   compute dtype (bf16)
        k = k_ref[0]                       # (block_h, Lk, D)
        v = v_ref[0]                       # (block_h, Lk, Dv)

        # Scores: batched MXU matmul with f32 accumulation; scale afterwards in
        # f32 (mathematically identical to (q / temperature) @ k^T).
        s = jnp.einsum("hqd,hkd->hqk", q, k,
                       preferred_element_type=jnp.float32)
        s = s * jnp.float32(inv_temp)

        if with_mask:
            # int8 mask block; (1, tq, Lk) broadcasts over the head dim when
            # the mask is head-invariant (head-deduplicated load).
            s = jnp.where(m_ref[0] == 0, jnp.float32(-1e9), s)

        # Numerically stable softmax over the last axis -- all in f32.
        m = jnp.max(s, axis=-1, keepdims=True)
        e = jnp.exp(s - m)
        denom = jnp.sum(e, axis=-1, keepdims=True)
        p = e * pl.reciprocal(denom, approx=True)       # (block_h, tq, Lk) f32

        # Output: bf16 operands on the MXU, f32 accumulation.
        out = jnp.einsum("hqk,hkd->hqd", p.astype(v.dtype), v,
                         preferred_element_type=jnp.float32)

        out_ref[0] = out.astype(out_ref.dtype)
        if return_attn:
            attn_ref[0] = p.astype(attn_ref.dtype)

    return kernel


def _pick_tile(n, target, align):
    """Largest t <= target with n % t == 0 and t % align == 0 (or t == n)."""
    if n <= target or n <= align:
        return n
    t = (min(target, n) // align) * align
    while t >= align:
        if n % t == 0:
            return t
        t -= align
    return n


def _vmem_limit_bytes(per_step_bytes):
    """Scoped-VMEM limit: cover double-buffered blocks, stay under physical VMEM."""
    try:
        info = pltpu.get_tpu_info()
        phys = int(getattr(info, "vmem_capacity_bytes", 64 << 20))
    except Exception:
        phys = 64 << 20
    cap = (phys * 3) // 4                    # headroom under physical VMEM
    need = 2 * per_step_bytes + (8 << 20)    # double-buffered blocks + slack
    return int(max(32 << 20, min(cap, need)))


def scale_dot_product_attention(q, k, v, mask=None, *, temperature,
                                block_h=None, tq=None, return_attn=True,
                                compute_dtype=jnp.bfloat16,
                                out_dtype=None, attn_dtype=jnp.bfloat16):
    """q: (..., Lq, D), k: (..., Lk, D), v: (..., Lk, Dv); mask (optional)
    broadcastable to (..., Lq, Lk).  Returns (output, attn); attn is None when
    return_attn=False.  Handles both for_spatial=True/False of the original
    module (both just transpose k's last two dims; leading dims are collapsed)."""
    assert q.ndim >= 3 and q.shape[:-2] == k.shape[:-2] == v.shape[:-2]
    lead = q.shape[:-2]
    Lq, D = q.shape[-2:]
    Lk, Dk = k.shape[-2:]
    Lkv, Dv = v.shape[-2:]
    assert Dk == D and Lkv == Lk

    # Collapse leading dims into (batch, heads); heads = last leading dim.
    Hh = lead[-1]
    Bb = 1
    for d in lead[:-1]:
        Bb *= d

    out_dtype = q.dtype if out_dtype is None else out_dtype

    q4 = q.reshape(Bb, Hh, Lq, D).astype(compute_dtype)
    k4 = k.reshape(Bb, Hh, Lk, D).astype(compute_dtype)
    v4 = v.reshape(Bb, Hh, Lk, Dv).astype(compute_dtype)

    with_mask = mask is not None
    mask_i8 = None
    mask_heads = 1
    if with_mask:
        m = jnp.asarray(mask)
        while m.ndim < q.ndim:
            m = m[None]
        head_invariant = m.shape[-3] == 1
        if head_invariant:
            tgt = lead[:-1] + (1, Lq, Lk)
        else:
            tgt = lead + (Lq, Lk)
        mask_heads = 1 if head_invariant else Hh
        mask_i8 = (jnp.broadcast_to(m, tgt) != 0).astype(jnp.int8)
        mask_i8 = mask_i8.reshape(Bb, mask_heads, Lq, Lk)

    # Tile selection: one head-block per step, Lq tiled so per-step blocks stay
    # small and the grid has plenty of steps to pipeline / split across cores.
    if block_h is None:
        block_h = 1
    assert Hh % block_h == 0
    if tq is None:
        tq = _pick_tile(Lq, 128, 32 if with_mask else 8)
    assert Lq % tq == 0 and (tq == Lq or tq % 8 == 0)

    grid = (Bb, Hh // block_h, Lq // tq)

    isz = lambda dt: jnp.dtype(dt).itemsize
    per_step = (block_h * tq * D + block_h * Lk * D
                + block_h * Lk * Dv) * isz(compute_dtype)
    per_step += block_h * tq * Dv * isz(out_dtype)
    if with_mask:
        per_step += (1 if mask_heads == 1 else block_h) * tq * Lk  # int8
    if return_attn:
        per_step += block_h * tq * Lk * isz(attn_dtype)

    inputs = [q4, k4, v4]
    in_specs = [
        pl.BlockSpec((1, block_h, tq, D), lambda b, h, qi: (b, h, qi, 0)),
        pl.BlockSpec((1, block_h, Lk, D), lambda b, h, qi: (b, h, 0, 0)),
        pl.BlockSpec((1, block_h, Lk, Dv), lambda b, h, qi: (b, h, 0, 0)),
    ]
    if with_mask:
        inputs.append(mask_i8)
        if mask_heads == 1:
            # Head-deduplicated: every head reads the same int8 mask block.
            in_specs.append(pl.BlockSpec((1, 1, tq, Lk),
                                         lambda b, h, qi: (b, 0, qi, 0)))
        else:
            in_specs.append(pl.BlockSpec((1, block_h, tq, Lk),
                                         lambda b, h, qi: (b, h, qi, 0)))

    out_shapes = [jax.ShapeDtypeStruct((Bb, Hh, Lq, Dv), out_dtype)]
    out_specs = [pl.BlockSpec((1, block_h, tq, Dv),
                              lambda b, h, qi: (b, h, qi, 0))]
    if return_attn:
        out_shapes.append(jax.ShapeDtypeStruct((Bb, Hh, Lq, Lk), attn_dtype))
        out_specs.append(pl.BlockSpec((1, block_h, tq, Lk),
                                      lambda b, h, qi: (b, h, qi, 0)))

    grid_spec = pltpu.PrefetchScalarGridSpec(
        num_scalar_prefetch=0,
        grid=grid,
        in_specs=in_specs,
        out_specs=out_specs,
    )

    results = pl.pallas_call(
        _make_kernel(1.0 / float(temperature), with_mask, return_attn),
        out_shape=tuple(out_shapes),
        grid_spec=grid_spec,
        compiler_params=pltpu.CompilerParams(
            # All grid axes write disjoint output blocks -> fully parallel;
            # batch/head axes can be sharded across TensorCores on v7x.
            # TODO(synk): switch the leading axis to pltpu.CORE_PARALLEL if
            # profiling on v7x shows only one TensorCore active.
            dimension_semantics=("parallel", "parallel", "parallel"),
            vmem_limit_bytes=_vmem_limit_bytes(per_step),
        ),
    )(*inputs)

    if return_attn:
        out_flat, attn_flat = results
        attn = attn_flat.reshape(lead + (Lq, Lk))
    else:
        if isinstance(results, (tuple, list)):
            (out_flat,) = results
        else:
            out_flat = results
        attn = None
    output = out_flat.reshape(lead + (Lq, Dv))
    return output, attn


def reference(q, k, v, mask, temperature):
    """Pure-JAX replica of the PyTorch forward (eval mode) for validation."""
    attn = jnp.matmul(q / temperature, jnp.swapaxes(k, -1, -2))
    if mask is not None:
        attn = jnp.where(mask == 0, -1e9, attn)
    attn = jax.nn.softmax(attn, axis=-1)
    output = jnp.matmul(attn, v)
    return output, attn


if __name__ == "__main__":
    # Small shapes consistent with the module: q/k/v (B, heads, seq, d_k).
    B, H, Lq, Lk, D, Dv = 2, 4, 16, 16, 16, 16
    temperature = float(D) ** 0.5   # = 4.0

    key = jax.random.PRNGKey(0)
    kq, kk, kv, km = jax.random.split(key, 4)
    q = jax.random.normal(kq, (B, H, Lq, D), jnp.float32)
    k = jax.random.normal(kk, (B, H, Lk, D), jnp.float32)
    v = jax.random.normal(kv, (B, H, Lk, Dv), jnp.float32)
    mask = (jax.random.uniform(km, (B, 1, Lq, Lk)) > 0.3).astype(jnp.float32)

    # bf16 MXU operands / bf16 attn store -> compare against the f32 reference
    # with bf16-level tolerance.
    tol = dict(atol=2e-2, rtol=2e-2)

    # --- unmasked path (mask=None) ---
    out, attn = scale_dot_product_attention(q, k, v, temperature=temperature)
    jax.block_until_ready((out, attn))
    out_r, attn_r = reference(q, k, v, None, temperature)
    assert out.shape == (B, H, Lq, Dv) and attn.shape == (B, H, Lq, Lk)
    assert jnp.allclose(attn.astype(jnp.float32), attn_r, **tol)
    assert jnp.allclose(out.astype(jnp.float32), out_r, **tol)

    # --- masked path (masked_fill(mask == 0, -1e9)), head-deduplicated int8 mask ---
    out_m, attn_m = scale_dot_product_attention(q, k, v, mask=mask,
                                                temperature=temperature)
    jax.block_until_ready((out_m, attn_m))
    out_mr, attn_mr = reference(q, k, v, mask, temperature)
    assert jnp.allclose(attn_m.astype(jnp.float32), attn_mr, **tol)
    assert jnp.allclose(out_m.astype(jnp.float32), out_mr, **tol)

    # --- output-only path (skip materializing attn: biggest traffic saving) ---
    out_o, attn_o = scale_dot_product_attention(q, k, v, mask=mask,
                                                temperature=temperature,
                                                return_attn=False)
    jax.block_until_ready(out_o)
    assert attn_o is None
    assert jnp.allclose(out_o.astype(jnp.float32), out_mr, **tol)

    print("KERNEL_OK")
</pallas_src>

<mosaic_0001>
module attributes {stable_mosaic.version = 11 : i64} {
  func.func @kernel(%arg0: i32, %arg1: i32, %arg2: i32, %arg3: memref<1x1x16x16xbf16, #tpu.memory_space<vmem>>, %arg4: memref<1x1x16x16xbf16, #tpu.memory_space<vmem>>, %arg5: memref<1x1x16x16xbf16, #tpu.memory_space<vmem>>, %arg6: memref<1x1x16x16xf32, #tpu.memory_space<vmem>>, %arg7: memref<1x1x16x16xbf16, #tpu.memory_space<vmem>>) attributes {dimension_semantics = [#tpu.dimension_semantics<parallel>, #tpu.dimension_semantics<parallel>, #tpu.dimension_semantics<parallel>], iteration_bounds = array<i64: 2, 4, 1>, scalar_prefetch = 0 : i64, scratch_operands = 0 : i64, tpu.core_type = #tpu.core_type<tc>, window_params = [{transform_indices = @transform_0, window_bounds = array<i64: 1, 1, 16, 16>}, {transform_indices = @transform_1, window_bounds = array<i64: 1, 1, 16, 16>}, {transform_indices = @transform_2, window_bounds = array<i64: 1, 1, 16, 16>}, {transform_indices = @transform_3, window_bounds = array<i64: 1, 1, 16, 16>}, {transform_indices = @transform_4, window_bounds = array<i64: 1, 1, 16, 16>}]} {
    %c0 = arith.constant 0 : index
    %c0_0 = arith.constant 0 : index
    %c0_1 = arith.constant 0 : index
    %c0_2 = arith.constant 0 : index
    %0 = vector.load %arg3[%c0, %c0_0, %c0_1, %c0_2] : memref<1x1x16x16xbf16, #tpu.memory_space<vmem>>, vector<1x1x16x16xbf16>
    %1 = vector.shape_cast %0 : vector<1x1x16x16xbf16> to vector<1x16x16xbf16>
    %c0_3 = arith.constant 0 : index
    %c0_4 = arith.constant 0 : index
    %c0_5 = arith.constant 0 : index
    %c0_6 = arith.constant 0 : index
    %2 = vector.load %arg4[%c0_3, %c0_4, %c0_5, %c0_6] : memref<1x1x16x16xbf16, #tpu.memory_space<vmem>>, vector<1x1x16x16xbf16>
    %3 = vector.shape_cast %2 : vector<1x1x16x16xbf16> to vector<1x16x16xbf16>
    %c0_7 = arith.constant 0 : index
    %c0_8 = arith.constant 0 : index
    %c0_9 = arith.constant 0 : index
    %c0_10 = arith.constant 0 : index
    %4 = vector.load %arg5[%c0_7, %c0_8, %c0_9, %c0_10] : memref<1x1x16x16xbf16, #tpu.memory_space<vmem>>, vector<1x1x16x16xbf16>
    %5 = vector.shape_cast %4 : vector<1x1x16x16xbf16> to vector<1x16x16xbf16>
    "tpu.trace_start"() <{level = 10 : i32, message = "hqd,hkd->hqk"}> : () -> ()
    %cst = arith.constant dense<0.000000e+00> : vector<1x16x16xf32>
    %6 = tpu.matmul %1, %3, %cst {dimension_numbers = #tpu.dot_dimension_numbers<[2], [2], [1], [1], [0, 0, 0, 1, 1, 1], [0], [0]>} : vector<1x16x16xbf16>, vector<1x16x16xbf16>, vector<1x16x16xf32> -> vector<1x16x16xf32>
    "tpu.trace_stop"() : () -> ()
    %cst_11 = arith.constant 2.500000e-01 : f32
    %7 = vector.broadcast %cst_11 : f32 to vector<1x16x16xf32>
    %8 = arith.mulf %6, %7 : vector<1x16x16xf32>
    %cst_12 = arith.constant dense<0xFF800000> : vector<1x16xf32>
    %9 = vector.multi_reduction <maximumf>, %8, %cst_12 [2] : vector<1x16x16xf32> to vector<1x16xf32>
    %10 = vector.shape_cast %9 : vector<1x16xf32> to vector<1x16x1xf32>
    %11 = vector.broadcast %10 : vector<1x16x1xf32> to vector<1x16x16xf32>
    %12 = arith.subf %8, %11 : vector<1x16x16xf32>
    %13 = math.exp %12 : vector<1x16x16xf32>
    %cst_13 = arith.constant dense<0.000000e+00> : vector<1x16xf32>
    %14 = vector.multi_reduction <add>, %13, %cst_13 [2] : vector<1x16x16xf32> to vector<1x16xf32>
    %15 = vector.shape_cast %14 : vector<1x16xf32> to vector<1x16x1xf32>
    %16 = tpu.reciprocal %15 {approx = true} : vector<1x16x1xf32> -> vector<1x16x1xf32>
    %17 = vector.broadcast %16 : vector<1x16x1xf32> to vector<1x16x16xf32>
    %18 = arith.mulf %13, %17 : vector<1x16x16xf32>
    %19 = arith.truncf %18 : vector<1x16x16xf32> to vector<1x16x16xbf16>
    "tpu.trace_start"() <{level = 10 : i32, message = "hqk,hkd->hqd"}> : () -> ()
    %cst_14 = arith.constant dense<0.000000e+00> : vector<1x16x16xf32>
    %20 = tpu.matmul %19, %5, %cst_14 {dimension_numbers = #tpu.dot_dimension_numbers<[2], [1], [1], [2], [0, 0, 0, 1, 1, 2], [0], [0]>} : vector<1x16x16xbf16>, vector<1x16x16xbf16>, vector<1x16x16xf32> -> vector<1x16x16xf32>
    "tpu.trace_stop"() : () -> ()
    %c0_15 = arith.constant 0 : index
    %c0_16 = arith.constant 0 : index
    %c0_17 = arith.constant 0 : index
    %c0_18 = arith.constant 0 : index
    %21 = vector.load %arg6[%c0_15, %c0_16, %c0_17, %c0_18] : memref<1x1x16x16xf32, #tpu.memory_space<vmem>>, vector<1x1x16x16xf32>
    %22 = vector.shape_cast %21 : vector<1x1x16x16xf32> to vector<1x16x16xf32>
    %23 = vector.shape_cast %20 : vector<1x16x16xf32> to vector<1x1x16x16xf32>
    tpu.vector_store %arg6[%c0_15, %c0_16, %c0_17, %c0_18], %23 {strides = array<i32>} : memref<1x1x16x16xf32, #tpu.memory_space<vmem>>, vector<1x1x16x16xf32>,
    %24 = arith.truncf %18 : vector<1x16x16xf32> to vector<1x16x16xbf16>
    %c0_19 = arith.constant 0 : index
    %c0_20 = arith.constant 0 : index
    %c0_21 = arith.constant 0 : index
    %c0_22 = arith.constant 0 : index
    %25 = vector.load %arg7[%c0_19, %c0_20, %c0_21, %c0_22] : memref<1x1x16x16xbf16, #tpu.memory_space<vmem>>, vector<1x1x16x16xbf16>
    %26 = vector.shape_cast %25 : vector<1x1x16x16xbf16> to vector<1x16x16xbf16>
    %27 = vector.shape_cast %24 : vector<1x16x16xbf16> to vector<1x1x16x16xbf16>
    tpu.vector_store %arg7[%c0_19, %c0_20, %c0_21, %c0_22], %27 {strides = array<i32>} : memref<1x1x16x16xbf16, #tpu.memory_space<vmem>>, vector<1x1x16x16xbf16>,
    return
  }
  func.func @transform_0(%arg0: i32, %arg1: i32, %arg2: i32) -> (i32, i32, i32, i32) {
    %c0_i32 = arith.constant 0 : i32
    %c0_i32_0 = arith.constant 0 : i32
    return %arg0, %arg1, %arg2, %c0_i32 : i32, i32, i32, i32
  }
  func.func @transform_1(%arg0: i32, %arg1: i32, %arg2: i32) -> (i32, i32, i32, i32) {
    %c0_i32 = arith.constant 0 : i32
    %c0_i32_0 = arith.constant 0 : i32
    %c0_i32_1 = arith.constant 0 : i32
    return %arg0, %arg1, %c0_i32, %c0_i32_0 : i32, i32, i32, i32
  }
  func.func @transform_2(%arg0: i32, %arg1: i32, %arg2: i32) -> (i32, i32, i32, i32) {
    %c0_i32 = arith.constant 0 : i32
    %c0_i32_0 = arith.constant 0 : i32
    %c0_i32_1 = arith.constant 0 : i32
    return %arg0, %arg1, %c0_i32, %c0_i32_0 : i32, i32, i32, i32
  }
  func.func @transform_3(%arg0: i32, %arg1: i32, %arg2: i32) -> (i32, i32, i32, i32) {
    %c0_i32 = arith.constant 0 : i32
    %c0_i32_0 = arith.constant 0 : i32
    return %arg0, %arg1, %arg2, %c0_i32 : i32, i32, i32, i32
  }
  func.func @transform_4(%arg0: i32, %arg1: i32, %arg2: i32) -> (i32, i32, i32, i32) {
    %c0_i32 = arith.constant 0 : i32
    %c0_i32_0 = arith.constant 0 : i32
    return %arg0, %arg1, %arg2, %c0_i32 : i32, i32, i32, i32
  }
}

</mosaic_0001>

<llo_original>
// kernel: tpu_custom_call.1
$region0: #{tpu_custom_call.1}
  #allocation0 [shape = 'u32[]', space=smem, size = 0x4, offset = 0x4, fixed_abs, tag = 'smem constant byte address 0x4 - core index']
  #allocation1 [shape = 'u32[144,128]{1,0:T(1,128)}', space=vmem, size = 0x12000, scoped, tag = 'internal scratch']
  %s0 = inlined_call_operand.hbm [shape: bf16[2,4,16,16], index: 0, kind: input, shape index: {}]
  %s1 = inlined_call_operand.hbm [shape: bf16[2,4,16,16], index: 1, kind: input, shape index: {}]
  %s2 = inlined_call_operand.hbm [shape: bf16[2,4,16,16], index: 2, kind: input, shape index: {}]
  %s3 = inlined_call_operand.hbm [shape: f32[2,4,16,16], index: 3, kind: output, shape index: {0}]
  %s4 = inlined_call_operand.hbm [shape: bf16[2,4,16,16], index: 4, kind: output, shape index: {1}]
  %5 = xla_tuple %s3, %s4
  %s6 = sld [smem:[#allocation0]]
  $region65: #{tpu_custom_call.1} parent=0
    _
  %s8 = ssub.s32 1, %s6
  %s9 = scalar_select 0, %s8, %s6
  $region1: #{tpu_custom_call.1} parent=0
    #allocation2 [shape = 'u8[8192]{0}', space=vmem, size = 0x2000, scoped, tag = 'input window, operand 0']
    #allocation3 [shape = 's32[2]{0}', space=sflag, size = 0x8, scoped, tag = 'scoped memory for tpu_custom_call.1']
    #allocation4 [shape = 's32[2]{0}', space=sflag, size = 0x8, scoped, tag = 'scoped memory for tpu_custom_call.1']
    #allocation5 [shape = 'u8[8192]{0}', space=vmem, size = 0x2000, scoped, tag = 'input window, operand 1']
    #allocation6 [shape = 's32[2]{0}', space=sflag, size = 0x8, scoped, tag = 'scoped memory for tpu_custom_call.1']
    #allocation7 [shape = 'u8[8192]{0}', space=vmem, size = 0x2000, scoped, tag = 'input window, operand 2']
    #allocation8 [shape = 'u8[16384]{0}', space=vmem, size = 0x4000, scoped, tag = 'output window, operand 0']
    #allocation9 [shape = 'u8[8192]{0}', space=vmem, size = 0x2000, scoped, tag = 'output window, operand 1']
    #allocation10 [shape = 's32[2]{0}', space=sflag, size = 0x8, scoped, tag = 'scoped memory for tpu_custom_call.1']
    %10 = vsyncpa [#allocation3], 0
    %s11 = scalar_lea.sflag [#allocation3], 1
    %12 = vsyncpa %s11, 0
    %13 = vsyncpa [#allocation6], 0
    %s14 = scalar_lea.sflag [#allocation6], 1
    %15 = vsyncpa %s14, 0
    %16 = vsyncpa [#allocation4], 0
    %s17 = scalar_lea.sflag [#allocation4], 1
    %18 = vsyncpa %s17, 0
    %19 = vsyncpa [#allocation10], 0
    %s20 = scalar_lea.sflag [#allocation10], 1
    %21 = vsyncpa %s20, 0
    loop: start=0, step=1, limit=10
    $region2: #{tpu_custom_call.1} parent=1 // loop_pre_header
      _
    $region3: #{tpu_custom_call.1} parent=1 // loop_header
      %s23 = sphi 0, %s27
      %p24 = scmp.ge.s32.totalorder %s23, 10
      %s30 = sphi 0, %s49
      %s31 = sphi 0, %s45
      %s32 = sphi 0, %s41
      %s33 = sphi 0, %s30
      %s34 = sphi 0, %s31
      %s35 = sphi 0, %s32
      %s36 = sphi 0, %s33
      %s37 = sphi 0, %s34
      %s38 = sphi 0, %s35
      %s56 = sphi 0, %s58
      %s59 = sphi 0, %s56
      %s60 = sphi 0, %s59
      %s76 = sphi 0, %s60
      %s84 = sphi 0, %s86
      %s87 = sphi 0, %s84
      %s88 = sphi 0, %s87
      %s104 = sphi 0, %s88
      %s112 = sphi 0, %s114
      %s115 = sphi 0, %s112
      %s116 = sphi 0, %s115
      %s132 = sphi 0, %s116
      %s142 = sphi 0, %s144
      %s145 = sphi 0, %s142
      %s146 = sphi 0, %s145
      %s162 = sphi 0, %s146
      %s172 = sphi 0, %s174
      %s175 = sphi 0, %s172
      %s176 = sphi 0, %s175
      %s192 = sphi 0, %s176
    $region4: #{tpu_custom_call.1} parent=1 // loop_header_branch
      %26 = sbr.rel (%p24) target = $region8
    $region5: #{tpu_custom_call.1} parent=1 // loop_body
      %s28 = ssub.s32 %s23, 1
      %s29 = ssub.s32 %s23, 2
      %s39 = sadd.s32 1, %s32
      %p40 = scmp.ge.s32.totalorder %s39, 1
      %s41 = scalar_select %p40, 0, %s39
      %s42 = sadd.s32 1, %s31
      %s43 = scalar_select %p40, %s42, %s31
      %p44 = scmp.ge.s32.totalorder %s43, 4
      %s45 = scalar_select %p44, 0, %s43
      %s46 = sadd.s32 1, %s30
      %s47 = scalar_select %p44, %s46, %s30
      %p48 = scmp.ge.s32.totalorder %s47, 2
      %s49 = scalar_select %p48, 0, %s47
      %s50 = ssub.s32 %s30, %s49
      %s51 = ssub.s32 %s31, %s45
      %s52 = sor.u32 %s50, %s51
      %s53 = ssub.s32 %s32, %s41
      %s54 = sor.u32 %s52, %s53
      %p55 = scmp.eq.s32.totalorder %s54, 0
      %s57 = sadd.s32 %s56, 1
      %s58 = scalar_select %p55, %s56, %s57
      %p61 = pneg %p55
      %p62 = scmp.eq.s32.totalorder %s23, 7
      %p63 = por %p61, %p62
      %p64 = scmp.ne.s32.totalorder %s56, %s59
      %p65 = scmp.eq.s32.totalorder %s23, 0
      %p66 = por %p64, %p65
      %p67 = scmp.ne.s32.totalorder %s56, %s59
      %p68 = scmp.eq.s32.totalorder %s28, 7
      %p69 = por %p67, %p68
      %p70 = scmp.ne.s32.totalorder %s59, %s60
      %p71 = scmp.eq.s32.totalorder %s28, 0
      %p72 = por %p70, %p71
      %p73 = scmp.ne.s32.totalorder %s59, %s60
      %p74 = scmp.eq.s32.totalorder %s29, 7
      %p75 = por %p73, %p74
      %p77 = scmp.ne.s32.totalorder %s60, %s76
      %p78 = scmp.eq.s32.totalorder %s29, 0
      %p79 = por %p77, %p78
      %s80 = ssub.s32 %s30, %s49
      %s81 = ssub.s32 %s31, %s45
      %s82 = sor.u32 %s80, %s81
      %p83 = scmp.eq.s32.totalorder %s82, 0
      %s85 = sadd.s32 %s84, 1
      %s86 = scalar_select %p83, %s84, %s85
      %p89 = pneg %p83
      %p90 = scmp.eq.s32.totalorder %s23, 7
      %p91 = por %p89, %p90
      %p92 = scmp.ne.s32.totalorder %s84, %s87
      %p93 = scmp.eq.s32.totalorder %s23, 0
      %p94 = por %p92, %p93
      %p95 = scmp.ne.s32.totalorder %s84, %s87
      %p96 = scmp.eq.s32.totalorder %s28, 7
      %p97 = por %p95, %p96
      %p98 = scmp.ne.s32.totalorder %s87, %s88
      %p99 = scmp.eq.s32.totalorder %s28, 0
      %p100 = por %p98, %p99
      %p101 = scmp.ne.s32.totalorder %s87, %s88
      %p102 = scmp.eq.s32.totalorder %s29, 7
      %p103 = por %p101, %p102
      %p105 = scmp.ne.s32.totalorder %s88, %s104
      %p106 = scmp.eq.s32.totalorder %s29, 0
      %p107 = por %p105, %p106
      %s108 = ssub.s32 %s30, %s49
      %s109 = ssub.s32 %s31, %s45
      %s110 = sor.u32 %s108, %s109
      %p111 = scmp.eq.s32.totalorder %s110, 0
      %s113 = sadd.s32 %s112, 1
      %s114 = scalar_select %p111, %s112, %s113
      %p117 = pneg %p111
      %p118 = scmp.eq.s32.totalorder %s23, 7
      %p119 = por %p117, %p118
      %p120 = scmp.ne.s32.totalorder %s112, %s115
      %p121 = scmp.eq.s32.totalorder %s23, 0
      %p122 = por %p120, %p121
      %p123 = scmp.ne.s32.totalorder %s112, %s115
      %p124 = scmp.eq.s32.totalorder %s28, 7
      %p125 = por %p123, %p124
      %p126 = scmp.ne.s32.totalorder %s115, %s116
      %p127 = scmp.eq.s32.totalorder %s28, 0
      %p128 = por %p126, %p127
      %p129 = scmp.ne.s32.totalorder %s115, %s116
      %p130 = scmp.eq.s32.totalorder %s29, 7
      %p131 = por %p129, %p130
      %p133 = scmp.ne.s32.totalorder %s116, %s132
      %p134 = scmp.eq.s32.totalorder %s29, 0
      %p135 = por %p133, %p134
      %s136 = ssub.s32 %s30, %s49
      %s137 = ssub.s32 %s31, %s45
      %s138 = sor.u32 %s136, %s137
      %s139 = ssub.s32 %s32, %s41
      %s140 = sor.u32 %s138, %s139
      %p141 = scmp.eq.s32.totalorder %s140, 0
      %s143 = sadd.s32 %s142, 1
      %s144 = scalar_select %p141, %s142, %s143
      %p147 = pneg %p141
      %p148 = scmp.eq.s32.totalorder %s23, 7
      %p149 = por %p147, %p148
      %p150 = scmp.ne.s32.totalorder %s142, %s145
      %p151 = scmp.eq.s32.totalorder %s23, 0
      %p152 = por %p150, %p151
      %p153 = scmp.ne.s32.totalorder %s142, %s145
      %p154 = scmp.eq.s32.totalorder %s28, 7
      %p155 = por %p153, %p154
      %p156 = scmp.ne.s32.totalorder %s145, %s146
      %p157 = scmp.eq.s32.totalorder %s28, 0
      %p158 = por %p156, %p157
      %p159 = scmp.ne.s32.totalorder %s145, %s146
      %p160 = scmp.eq.s32.totalorder %s29, 7
      %p161 = por %p159, %p160
      %p163 = scmp.ne.s32.totalorder %s146, %s162
      %p164 = scmp.eq.s32.totalorder %s29, 0
      %p165 = por %p163, %p164
      %s166 = ssub.s32 %s30, %s49
      %s167 = ssub.s32 %s31, %s45
      %s168 = sor.u32 %s166, %s167
      %s169 = ssub.s32 %s32, %s41
      %s170 = sor.u32 %s168, %s169
      %p171 = scmp.eq.s32.totalorder %s170, 0
      %s173 = sadd.s32 %s172, 1
      %s174 = scalar_select %p171, %s172, %s173
      %p177 = pneg %p171
      %p178 = scmp.eq.s32.totalorder %s23, 7
      %p179 = por %p177, %p178
      %p180 = scmp.ne.s32.totalorder %s172, %s175
      %p181 = scmp.eq.s32.totalorder %s23, 0
      %p182 = por %p180, %p181
      %p183 = scmp.ne.s32.totalorder %s172, %s175
      %p184 = scmp.eq.s32.totalorder %s28, 7
      %p185 = por %p183, %p184
      %p186 = scmp.ne.s32.totalorder %s175, %s176
      %p187 = scmp.eq.s32.totalorder %s28, 0
      %p188 = por %p186, %p187
      %p189 = scmp.ne.s32.totalorder %s175, %s176
      %p190 = scmp.eq.s32.totalorder %s29, 7
      %p191 = por %p189, %p190
      %p193 = scmp.ne.s32.totalorder %s176, %s192
      %p194 = scmp.eq.s32.totalorder %s29, 0
      %p195 = por %p193, %p194
      %p196 = scmp.le.s32.totalorder 1, %s23
      %p197 = scmp.lt.s32.totalorder %s23, 9
      %p198 = pnand %p196, %p197
      %p199 = pneg %p198
      // Predicated region
      $region9: #{tpu_custom_call.1} parent=5 // pred_check
        _
      $region10: #{tpu_custom_call.1} parent=5 // pred_check_branch
        %201 = sbr.rel (%p198) target = $region12
      $region11: #{tpu_custom_call.1} parent=5 // pred_region
        %s202 = ssub.s32 %s23, 1
      $region12: #{tpu_custom_call.1} parent=5 // pred_fallthru
        _
      %p203 = scmp.lt.s32.totalorder %s23, 8
      // Predicated region
      $region13: #{tpu_custom_call.1} parent=5 // pred_check
        %p204 = pneg %p203
      $region14: #{tpu_custom_call.1} parent=5 // pred_check_branch
        %206 = sbr.rel (%p204) target = $region16
      $region15: #{tpu_custom_call.1} parent=5 // pred_region
        // Predicated region
        $region17: #{tpu_custom_call.1} parent=15 // pred_check
          %p207 = pneg %p66
        $region18: #{tpu_custom_call.1} parent=15 // pred_check_branch
          %209 = sbr.rel (%p207) target = $region20
        $region19: #{tpu_custom_call.1} parent=15 // pred_region
          %s210 = sand.u32 %s56, 1
          %s211 = scalar_lea.sflag [#allocation3], %s210
          %s212 = sand.u32 %s56, 1
          %s213 = smul.addr %s212, 8
          %s214 = scalar_lea.vmem [#allocation2], %s213
          %s215 = smul.u32 2, %s32
          %s217 = ssub.s32 128, 128
          %218 = vsyncadd %s211, %s217
          %s219 = smul.addr %s31, 2
          %s220 = sadd.s32 %s215, %s219
          %s221 = smul.addr %s30, 8
          %s222 = sadd.s32 %s220, %s221
          %s223 = smul.addr %s222, 64
          %s224 = scalar_lea.hbm %s0, %s223
          %s225 = sshll.u32 %s214, 4
          %s226 = int_to_ptr.vmem [resolvable:$true] %s225
          %231 = dma.hbm_to_vmem [thread:$0]  %s224, 128, %s226, %s211, 64, 64, 4
        $region20: #{tpu_custom_call.1} parent=15 // pred_fallthru
          _
        // Predicated region
        $region21: #{tpu_custom_call.1} parent=15 // pred_check
          %p232 = pneg %p94
        $region22: #{tpu_custom_call.1} parent=15 // pred_check_branch
          %234 = sbr.rel (%p232) target = $region24
        $region23: #{tpu_custom_call.1} parent=15 // pred_region
          %s235 = sand.u32 %s23, 1
          %s236 = scalar_lea.sflag [#allocation6], %s235
          %s237 = sand.u32 %s84, 1
          %s238 = smul.addr %s237, 8
          %s239 = scalar_lea.vmem [#allocation5], %s238
          %s241 = ssub.s32 128, 128
          %242 = vsyncadd %s236, %s241
          %s243 = smul.addr %s31, 2
          %s244 = smul.addr %s30, 8
          %s245 = sadd.s32 %s243, %s244
          %s246 = smul.addr %s245, 64
          %s247 = scalar_lea.hbm %s1, %s246
          %s248 = sshll.u32 %s239, 4
          %s249 = int_to_ptr.vmem [resolvable:$true] %s248
          %254 = dma.hbm_to_vmem [thread:$0]  %s247, 128, %s249, %s236, 64, 64, 4
        $region24: #{tpu_custom_call.1} parent=15 // pred_fallthru
          _
        // Predicated region
        $region25: #{tpu_custom_call.1} parent=15 // pred_check
          %p255 = pneg %p122
        $region26: #{tpu_custom_call.1} parent=15 // pred_check_branch
          %257 = sbr.rel (%p255) target = $region28
        $region27: #{tpu_custom_call.1} parent=15 // pred_region
          %s258 = sand.u32 %s23, 1
          %s259 = scalar_lea.sflag [#allocation6], %s258
          %s260 = sand.u32 %s112, 1
          %s261 = smul.addr %s260, 8
          %s262 = scalar_lea.vmem [#allocation7], %s261
          %s264 = ssub.s32 128, 128
          %265 = vsyncadd %s259, %s264
          %s266 = smul.addr %s31, 2
          %s267 = smul.addr %s30, 8
          %s268 = sadd.s32 %s266, %s267
          %s269 = smul.addr %s268, 64
          %s270 = scalar_lea.hbm %s2, %s269
          %s271 = sshll.u32 %s262, 4
          %s272 = int_to_ptr.vmem [resolvable:$true] %s271
          %277 = dma.hbm_to_vmem [thread:$0]  %s270, 128, %s272, %s259, 64, 64, 4
        $region28: #{tpu_custom_call.1} parent=15 // pred_fallthru
          _
      $region16: #{tpu_custom_call.1} parent=5 // pred_fallthru
        _
      %p278 = scmp.le.s32.totalorder 1, %s23
      %p279 = scmp.lt.s32.totalorder %s23, 9
      %p280 = pnand %p278, %p279
      %p281 = pneg %p280
      // Predicated region
      $region29: #{tpu_custom_call.1} parent=5 // pred_check
        _
      $region30: #{tpu_custom_call.1} parent=5 // pred_check_branch
        %283 = sbr.rel (%p280) target = $region32
      $region31: #{tpu_custom_call.1} parent=5 // pred_region
        %s284 = ssub.s32 %s23, 1
        %s285 = sand.u32 %s59, 1
        %s286 = scalar_lea.sflag [#allocation3], %s285
        %s287 = sand.u32 %s59, 1
        %s288 = smul.addr %s287, 8
        %s289 = scalar_lea.vmem [#allocation2], %s288
        // Predicated region
        $region33: #{tpu_custom_call.1} parent=31 // pred_check
          %p290 = pneg %p72
        $region34: #{tpu_custom_call.1} parent=31 // pred_check_branch
          %292 = sbr.rel (%p290) target = $region36
        $region35: #{tpu_custom_call.1} parent=31 // pred_region
          %293 = dma.done %s286, 128
        $region36: #{tpu_custom_call.1} parent=31 // pred_fallthru
          _
        %s294 = sand.u32 %s28, 1
        %s295 = scalar_lea.sflag [#allocation6], %s294
        %s296 = sand.u32 %s87, 1
        %s297 = smul.addr %s296, 8
        %s298 = scalar_lea.vmem [#allocation5], %s297
        // Predicated region
        $region37: #{tpu_custom_call.1} parent=31 // pred_check
          %p299 = pneg %p100
        $region38: #{tpu_custom_call.1} parent=31 // pred_check_branch
          %301 = sbr.rel (%p299) target = $region40
        $region39: #{tpu_custom_call.1} parent=31 // pred_region
          %302 = dma.done %s295, 128
        $region40: #{tpu_custom_call.1} parent=31 // pred_fallthru
          _
        %s303 = sand.u32 %s28, 1
        %s304 = scalar_lea.sflag [#allocation6], %s303
        %s305 = sand.u32 %s115, 1
        %s306 = smul.addr %s305, 8
        %s307 = scalar_lea.vmem [#allocation7], %s306
        // Predicated region
        $region41: #{tpu_custom_call.1} parent=31 // pred_check
          %p308 = pneg %p128
        $region42: #{tpu_custom_call.1} parent=31 // pred_check_branch
          %310 = sbr.rel (%p308) target = $region44
        $region43: #{tpu_custom_call.1} parent=31 // pred_region
          %311 = dma.done %s304, 128
        $region44: #{tpu_custom_call.1} parent=31 // pred_fallthru
          _
        %s312 = sand.u32 %s59, 1
        %s313 = scalar_lea.sflag [#allocation3], %s312
        %s314 = sand.u32 %s59, 1
        %s315 = smul.addr %s314, 8
        %s316 = scalar_lea.vmem [#allocation2], %s315
        %p317 = pneg %p72
        %p318 = pneg %p69
        %s319 = sand.u32 %s28, 1
        %s320 = scalar_lea.sflag [#allocation6], %s319
        %s321 = sand.u32 %s87, 1
        %s322 = smul.addr %s321, 8
        %s323 = scalar_lea.vmem [#allocation5], %s322
        %p324 = pneg %p100
        %p325 = pneg %p97
        %s326 = sand.u32 %s28, 1
        %s327 = scalar_lea.sflag [#allocation6], %s326
        %s328 = sand.u32 %s115, 1
        %s329 = smul.addr %s328, 8
        %s330 = scalar_lea.vmem [#allocation7], %s329
        %p331 = pneg %p128
        %p332 = pneg %p125
        %p333 = pneg %p158
        %p334 = pneg %p155
        %s335 = sand.u32 %s145, 1
        %s336 = scalar_lea.sflag [#allocation4], %s335
        %s337 = sand.u32 %s145, 1
        %s338 = smul.addr %s337, 16
        %s339 = scalar_lea.vmem [#allocation8], %s338
        %p340 = pneg %p188
        %p341 = pneg %p185
        %s342 = sand.u32 %s175, 1
        %s343 = scalar_lea.sflag [#allocation10], %s342
        %s344 = sand.u32 %s175, 1
        %s345 = smul.addr %s344, 8
        %s346 = scalar_lea.vmem [#allocation9], %s345
        %s347 = smul.u32 2, %s35
        %s348 = smul.u32 2, %s35
        %s349 = smul.u32 2, %s35
        %v351 = vld [vmem:[%s289] sm:$0xf]
        %v352 = vld [vmem:[%s289 + $0x4] sm:$0xf]
        %v353 = vld [vmem:[%s298] sm:$0xf]
        %v354 = vld [vmem:[%s298 + $0x4] sm:$0xf]
        %v355 = vld [vmem:[%s307] sm:$0xf]
        %v356 = vld [vmem:[%s307 + $0x4] sm:$0xf]
        %v359 = vunpack.c.l.b16 %v351
        %v360 = vunpack.c.l.b16 %v352
        %v361 = vpack.c.b16 %v360, %v359
        %v364 = vunpack.c.l.b16 %v353
        %v365 = vunpack.c.l.b16 %v354
        %v366 = vpack.c.b16 %v365, %v364
        %vm367 = vcmask 130048
        %v369 = vsel %vm367, %v361, 0
        %v372 = vsel %vm367, %v366, 0
        %374 = vmatprep.subr.bf16.mxu0 0
        %375 = vmatpush1.bf16.xpose.msra.mxu0 0
        %376 = vmatprep.subr.bf16.mxu0 0
        %377 = vmatpush1.bf16.xpose.msra.mxu0 0
        %378 = vmatprep.subr.bf16.mxu0 0
        %379 = vmatpush1.bf16.xpose.msra.mxu0 0
        %380 = vmatprep.subr.bf16.mxu0 0
        %381 = vmatpush1.bf16.xpose.msra.mxu0 0
        %382 = vmatprep.subr.bf16.mxu0 0
        %383 = vmatpush1.bf16.xpose.msra.mxu0 0
        %384 = vmatprep.subr.bf16.mxu0 0
        %385 = vmatpush1.bf16.xpose.msra.mxu0 0
        %386 = vmatprep.subr.bf16.mxu0 0
        %387 = vmatpush1.bf16.xpose.msra.mxu0 0
        %388 = vmatprep.subr.bf16.mxu0 0
        %389 = vmatpush1.bf16.xpose.msra.mxu0 %v372
        %390 = vmatprep.subr.bf16.mxu0 0
        %391 = vmatpush2.bf16.xpose.msra.mxu0 0
        %392 = vmatprep.subr.bf16.mxu0 0
        %393 = vmatpush2.bf16.xpose.msra.mxu0 0
        %394 = vmatprep.subr.bf16.mxu0 0
        %395 = vmatpush2.bf16.xpose.msra.mxu0 0
        %396 = vmatprep.subr.bf16.mxu0 0
        %397 = vmatpush2.bf16.xpose.msra.mxu0 0
        %398 = vmatprep.subr.bf16.mxu0 0
        %399 = vmatpush2.bf16.xpose.msra.mxu0 0
        %400 = vmatprep.subr.bf16.mxu0 0
        %401 = vmatpush2.bf16.xpose.msra.mxu0 0
        %402 = vmatprep.subr.bf16.mxu0 0
        %403 = vmatpush2.bf16.xpose.msra.mxu0 0
        %404 = vmatprep.subr.bf16.mxu0 0
        %405 = vmatpush2.bf16.xpose.msra.mxu0 0
        %406 = vmatprep.mubr.bf16.mxu0 0
        %407 = vmatmul.mubr.bf16.gmra.mxu0 %v369
        %v408 = vpop.f32.mrf.mxu0
        %v409 = vadd.f32 0.0, %v408
        %v410 = vpop.f32.mrf.mxu0
        %v411 = vpop.f32.mrf.mxu0
        %v412 = vadd.f32 0.0, %v411
        %v413 = vpop.f32.mrf.mxu0
        %414 = vdwg.mxu0
        %v415 = vmul.f32 %v409, 0.25
        %v416 = vmul.f32 %v412, 0.25
        %v417 = vsel %vm367, %v415, -inf
        %418 = vmax.xlane.f32.xlu0 %v417
        %v419 = vpop.xlane.xlu0 %418
        %v420 = vsel %vm367, %v416, -inf
        %421 = vmax.xlane.f32.xlu0 %v420
        %v422 = vpop.xlane.xlu0 %421
        %v423 = vsub.f32 %v415, %v419
        %v424 = vsub.f32 %v416, %v422
        %v425 = vmul.f32 %v423, 1.442695
        %v426 = vpow.pop %v425
        %v427 = vmul.f32 %v424, 1.442695
        %v428 = vpow.pop %v427
        %v429 = vsel %vm367, %v426, 0.0
        %430 = vadd.xlane.f32.xlu0 %v429
        %v431 = vpop.xlane.xlu0 %430
        %v432 = vsel %vm367, %v428, 0.0
        %433 = vadd.xlane.f32.xlu0 %v432
        %v434 = vpop.xlane.xlu0 %433
        %v435 = vrcp.pop %v431
        %v436 = vrcp.pop %v434
        %v437 = vmul.f32 %v426, %v435
        %v438 = vmul.f32 %v428, %v436
        %v439 = vpack.c.bf16 %v438, %v437
        %v442 = vunpack.c.l.b16 %v355
        %v443 = vunpack.c.l.b16 %v356
        %v444 = vpack.c.b16 %v443, %v442
        %v447 = vsel %vm367, %v439, 0
        %449 = vmatprep.subr.bf16.mxu0 0
        %450 = vmatpush1.bf16.msra.mxu0 0
        %451 = vmatprep.subr.bf16.mxu0 0
        %452 = vmatpush1.bf16.msra.mxu0 0
        %453 = vmatprep.subr.bf16.mxu0 0
        %454 = vmatpush1.bf16.msra.mxu0 0
        %455 = vmatprep.subr.bf16.mxu0 0
        %456 = vmatpush1.bf16.msra.mxu0 0
        %457 = vmatprep.subr.bf16.mxu0 0
        %458 = vmatpush1.bf16.msra.mxu0 0
        %459 = vmatprep.subr.bf16.mxu0 0
        %460 = vmatpush1.bf16.msra.mxu0 0
        %461 = vmatprep.subr.bf16.mxu0 0
        %462 = vmatpush1.bf16.msra.mxu0 0
        %463 = vmatprep.subr.bf16.mxu0 0
        %464 = vmatpush1.bf16.msra.mxu0 %v444
        %465 = vmatprep.subr.bf16.mxu0 0
        %466 = vmatpush2.bf16.msra.mxu0 0
        %467 = vmatprep.subr.bf16.mxu0 0
        %468 = vmatpush2.bf16.msra.mxu0 0
        %469 = vmatprep.subr.bf16.mxu0 0
        %470 = vmatpush2.bf16.msra.mxu0 0
        %471 = vmatprep.subr.bf16.mxu0 0
        %472 = vmatpush2.bf16.msra.mxu0 0
        %473 = vmatprep.subr.bf16.mxu0 0
        %474 = vmatpush2.bf16.msra.mxu0 0
        %475 = vmatprep.subr.bf16.mxu0 0
        %476 = vmatpush2.bf16.msra.mxu0 0
        %477 = vmatprep.subr.bf16.mxu0 0
        %478 = vmatpush2.bf16.msra.mxu0 0
        %479 = vmatprep.subr.bf16.mxu0 0
        %480 = vmatpush2.bf16.msra.mxu0 0
        %481 = vmatprep.mubr.bf16.mxu0 0
        %482 = vmatmul.mubr.bf16.gmra.mxu0 %v447
        %v483 = vpop.f32.mrf.mxu0
        %v484 = vadd.f32 0.0, %v483
        %v485 = vpop.f32.mrf.mxu0
        %v486 = vpop.f32.mrf.mxu0
        %v487 = vadd.f32 0.0, %v486
        %v488 = vpop.f32.mrf.mxu0
        %489 = vdwg.mxu0
        %490 = vst.msk [vmem:[%s339] sm:$0xff] %vm367, %v484
        %491 = vst.msk [vmem:[%s339 + $0x8] sm:$0xff] %vm367, %v487
        %v493 = vunpack.c.l.b16 %v439
        %v494 = vunpack.c.h.b16 %v439
        %v495 = vpack.c.b16 %v493, %v493
        %v496 = vpack.c.b16 %v494, %v494
        %vm499 = vcmask 125952
        %500 = vst.msk [vmem:[%s346] sm:$0xf] %vm499, %v495
        %501 = vst.msk [vmem:[%s346 + $0x4] sm:$0xf] %vm499, %v496
        %s502 = sand.u32 %s145, 1
        %s503 = scalar_lea.sflag [#allocation4], %s502
        %s504 = sand.u32 %s145, 1
        %s505 = smul.addr %s504, 16
        %s506 = scalar_lea.vmem [#allocation8], %s505
        %s507 = sand.u32 %s175, 1
        %s508 = scalar_lea.sflag [#allocation10], %s507
        %s509 = sand.u32 %s175, 1
        %s510 = smul.addr %s509, 8
        %s511 = scalar_lea.vmem [#allocation9], %s510
        // Predicated region
        $region45: #{tpu_custom_call.1} parent=31 // pred_check
          %p512 = pneg %p155
        $region46: #{tpu_custom_call.1} parent=31 // pred_check_branch
          %514 = sbr.rel (%p512) target = $region48
        $region47: #{tpu_custom_call.1} parent=31 // pred_region
          %s515 = smul.u32 2, %s35
          %s517 = ssub.s32 256, 256
          %518 = vsyncadd %s503, %s517
          %s519 = smul.addr %s34, 2
          %s520 = sadd.s32 %s515, %s519
          %s521 = smul.addr %s33, 8
          %s522 = sadd.s32 %s520, %s521
          %s523 = smul.addr %s522, 128
          %s524 = scalar_lea.hbm %s3, %s523
          %s525 = sshll.u32 %s506, 4
          %s526 = int_to_ptr.vmem [resolvable:$true] %s525
          %531 = dma.vmem_to_hbm [thread:$0]  %s526, 256, %s524, %s503, 128, 128, 8
        $region48: #{tpu_custom_call.1} parent=31 // pred_fallthru
          _
        // Predicated region
        $region49: #{tpu_custom_call.1} parent=31 // pred_check
          %p532 = pneg %p185
        $region50: #{tpu_custom_call.1} parent=31 // pred_check_branch
          %534 = sbr.rel (%p532) target = $region52
        $region51: #{tpu_custom_call.1} parent=31 // pred_region
          %s535 = smul.u32 2, %s35
          %s537 = ssub.s32 128, 128
          %538 = vsyncadd %s508, %s537
          %s539 = smul.addr %s34, 2
          %s540 = sadd.s32 %s535, %s539
          %s541 = smul.addr %s33, 8
          %s542 = sadd.s32 %s540, %s541
          %s543 = smul.addr %s542, 64
          %s544 = scalar_lea.hbm %s4, %s543
          %s545 = sshll.u32 %s511, 4
          %s546 = int_to_ptr.vmem [resolvable:$true] %s545
          %551 = dma.vmem_to_hbm [thread:$0]  %s546, 128, %s544, %s508, 64, 64, 4
        $region52: #{tpu_custom_call.1} parent=31 // pred_fallthru
          _
      $region32: #{tpu_custom_call.1} parent=5 // pred_fallthru
        _
      %p552 = scmp.le.s32.totalorder 2, %s23
      // Predicated region
      $region53: #{tpu_custom_call.1} parent=5 // pred_check
        %p553 = pneg %p552
      $region54: #{tpu_custom_call.1} parent=5 // pred_check_branch
        %555 = sbr.rel (%p553) target = $region56
      $region55: #{tpu_custom_call.1} parent=5 // pred_region
        %s556 = ssub.s32 %s23, 2
        // Predicated region
        $region57: #{tpu_custom_call.1} parent=55 // pred_check
          %p557 = pneg %p161
        $region58: #{tpu_custom_call.1} parent=55 // pred_check_branch
          %559 = sbr.rel (%p557) target = $region60
        $region59: #{tpu_custom_call.1} parent=55 // pred_region
          %s560 = sand.u32 %s146, 1
          %s561 = scalar_lea.sflag [#allocation4], %s560
          %s562 = sand.u32 %s146, 1
          %s563 = smul.addr %s562, 16
          %s564 = scalar_lea.vmem [#allocation8], %s563
          %565 = dma.done %s561, 256
        $region60: #{tpu_custom_call.1} parent=55 // pred_fallthru
          _
        // Predicated region
        $region61: #{tpu_custom_call.1} parent=55 // pred_check
          %p566 = pneg %p191
        $region62: #{tpu_custom_call.1} parent=55 // pred_check_branch
          %568 = sbr.rel (%p566) target = $region64
        $region63: #{tpu_custom_call.1} parent=55 // pred_region
          %s569 = sand.u32 %s176, 1
          %s570 = scalar_lea.sflag [#allocation10], %s569
          %s571 = sand.u32 %s176, 1
          %s572 = smul.addr %s571, 8
          %s573 = scalar_lea.vmem [#allocation9], %s572
          %574 = dma.done %s570, 128
        $region64: #{tpu_custom_call.1} parent=55 // pred_fallthru
          _
      $region56: #{tpu_custom_call.1} parent=5 // pred_fallthru
        _
    $region6: #{tpu_custom_call.1} parent=1 // loop_footer
      %s27 = sadd.s32 1, %s23
    $region7: #{tpu_custom_call.1} parent=1 // loop_footer_branch
      %22 = sbr.rel target = $region3
    $region8: #{tpu_custom_call.1} parent=1 // loop_exit
      _
    %575 = vsyncpa [#allocation3], 1
    %s576 = scalar_lea.sflag [#allocation3], 1
    %577 = vsyncpa %s576, 1
    %578 = vsyncpa [#allocation6], 1
    %s579 = scalar_lea.sflag [#allocation6], 1
    %580 = vsyncpa %s579, 1
    %581 = vsyncpa [#allocation4], 1
    %s582 = scalar_lea.sflag [#allocation4], 1
    %583 = vsyncpa %s582, 1
    %584 = vsyncpa [#allocation10], 1
    %s585 = scalar_lea.sflag [#allocation10], 1
    %586 = vsyncpa %s585, 1

</llo_original>
